<compile_context>
chip_gen: v5e
topology: v5e:2x2
jax: 0.10.0
libtpu: 0.0.40
codegen_flags: <defaults>
</compile_context>

<pallas_src>
import math

import jax
import jax.numpy as jnp
from jax.experimental import pallas as pl
from jax.experimental.pallas import tpu as pltpu

NUM_CLASSES = 7
NA = 3                                  # anchors per scale
BALANCE = (4.0, 1.0, 0.4)
BOX_WEIGHT = 0.05
CLS_WEIGHT = 0.5
OBJ_WEIGHT = 1.0
EPS_CIOU = 1e-7

_CLS_HALF = NUM_CLASSES + ((-NUM_CLASSES) % 8)   # sublane-aligned half (8)
_MISC_ROWS = 8
_OUT_LANES = 128

# Deterministic "parameters" (the module's registered anchor buffer).
ANCHORS = jnp.array(
    [[[10, 13], [16, 30], [33, 23]],
     [[30, 61], [62, 45], [59, 119]],
     [[116, 90], [156, 198], [373, 326]]], dtype=jnp.float32)


def _bce_with_logits(x, t):
    # Numerically-stable BCEWithLogits (== torch BCEWithLogitsLoss, reduction='none')
    return jnp.maximum(x, 0.0) - x * t + jnp.log1p(jnp.exp(-jnp.abs(x)))


# ---------------------------------------------------------------------------
# Fused kernel.
#   refs[0:nl]   : obj-channel blocks (na, gh_i, gw_i) of the current batch,
#                  one per scale (read directly from the NCHW predictions).
#   refs[nl+0]   : boxes  [8, Np]   rows 0..3 pbox (x1,y1,x2,y2), 4..7 tbox
#   refs[nl+1]   : cls    [16, Np]  rows 0..nc-1 pcls logits, 8..8+nc-1 one-hot
#   refs[nl+2]   : misc   [8, Np]   rows: dtheta, w_box, w_cls, p_obj, w_objc
#   refs[nl+3]   : out    [1, 1, 128] per-batch block:
#                  lane 0 = weighted softplus sum of this batch's obj logits,
#                  lanes 1..3 (batch 0 only) = box / cls / obj-corr sums.
# Weight rows already carry validity, count normalization and loss weights.
# ---------------------------------------------------------------------------
def _make_fused_kernel(nl, obj_weights):
    obj_weights = tuple(float(w) for w in obj_weights)

    def kernel(*refs):
        pred_refs = refs[:nl]
        boxes_ref = refs[nl]
        cls_ref = refs[nl + 1]
        misc_ref = refs[nl + 2]
        out_ref = refs[nl + 3]

        b = pl.program_id(0)

        # ---- objectness BCE base term: weighted sum of softplus(x) over this
        # batch's grids of all scales (per-scale weight is a compile-time
        # constant, so no per-element index math rides the critical path).
        obj_b = jnp.float32(0.0)
        for pref, w in zip(pred_refs, obj_weights):
            x = pref[...]                                   # (na, gh, gw)
            softplus = jnp.maximum(x, 0.0) + jnp.log1p(jnp.exp(-jnp.abs(x)))
            obj_b = obj_b + w * jnp.sum(softplus)

        lane = jax.lax.broadcasted_iota(jnp.int32, (1, 1, _OUT_LANES), 2)
        out_ref[...] = jnp.where(lane == 0, obj_b, 0.0)

        # ---- matched-target losses (computed once, on grid step 0)
        @pl.when(b == 0)
        def _():
            eps = EPS_CIOU
            boxes = boxes_ref[...]                          # (8, Np)
            pb = boxes[0:4, :]                              # pbox rows
            tb = boxes[4:8, :]                              # tbox rows
            mx = jnp.maximum(pb, tb)                        # (4, Np)
            mn = jnp.minimum(pb, tb)

            b1x1, b1y1, b1x2, b1y2 = pb[0:1], pb[1:2], pb[2:3], pb[3:4]
            b2x1, b2y1, b2x2, b2y2 = tb[0:1], tb[1:2], tb[2:3], tb[3:4]

            inter_w = jnp.maximum(mn[2:3] - mx[0:1], 0.0)
            inter_h = jnp.maximum(mn[3:4] - mx[1:2], 0.0)
            inter_area = inter_w * inter_h

            area1 = (b1x2 - b1x1) * (b1y2 - b1y1)
            area2 = (b2x2 - b2x1) * (b2y2 - b2y1)
            union = area1 + area2 - inter_area + eps
            iou = inter_area / union

            center_dist = ((((b1x1 + b1x2) - (b2x1 + b2x2)) * 0.5) ** 2
                           + (((b1y1 + b1y2) - (b2y1 + b2y2)) * 0.5) ** 2)
            c_diag = ((mx[2:3] - mn[0:1]) ** 2
                      + (mx[3:4] - mn[1:2]) ** 2 + eps)

            misc = misc_ref[...]                            # (8, Np)
            dtheta = misc[0:1]
            v = (4.0 / (math.pi ** 2)) * dtheta * dtheta
            alpha = v / (1.0 - iou + v + eps)
            ciou = iou - (center_dist / c_diag + alpha * v)

            box_s = jnp.sum((1.0 - ciou) * misc[1:2])

            cls = cls_ref[...]                              # (16, Np)
            pcls = cls[0:NUM_CLASSES, :]
            tcls = cls[_CLS_HALF:_CLS_HALF + NUM_CLASSES, :]
            cls_s = jnp.sum(_bce_with_logits(pcls, tcls) * misc[2:3])

            # BCE(x, 1) - BCE(x, 0) = -x, applied once per matched cell
            objc_s = jnp.sum(-misc[3:4] * misc[4:5])

            out_ref[...] += (jnp.where(lane == 1, box_s, 0.0)
                             + jnp.where(lane == 2, cls_s, 0.0)
                             + jnp.where(lane == 3, objc_s, 0.0))

    return kernel


# ---------------------------------------------------------------------------
# Glue: target standardization, anchor matching, gathers, weight rows
# ---------------------------------------------------------------------------
def _standardize_targets(targets):
    if targets.ndim == 3 and targets.shape[2] >= 5:
        return targets
    if targets.ndim == 2 and targets.shape[1] >= 5:
        return targets[None]
    if targets.size % 6 == 0:
        return targets.reshape(-1, 6)[None]
    return jnp.zeros((1, 0, 6), dtype=jnp.float32)


def yolo_loss(predictions, targets):
    nl = len(predictions)
    B = predictions[0].shape[0]

    targets = _standardize_targets(targets.astype(jnp.float32))
    tb, nt = targets.shape[0], targets.shape[1]
    n = tb * nt
    if n == 0:
        flat = jnp.zeros((1, 6), jnp.float32)
        batch_idx_all = jnp.zeros((1,), jnp.int32)
        n = 1
    else:
        flat = targets.reshape(n, targets.shape[2])[:, :6]
        batch_idx_all = jnp.repeat(jnp.arange(tb, dtype=jnp.int32), nt)

    # validity mask (mirrors _build_targets); sanitize non-finite rows so the
    # masked (weight 0) CIoU math stays NaN-free.
    finite = jnp.all(jnp.isfinite(flat), axis=1)
    flat = jnp.where(jnp.isfinite(flat), flat, 0.0)
    positive = jnp.all(flat[:, 1:5] > 0, axis=1)
    cls_ok = (flat[:, 0] >= 0) & (flat[:, 0] < NUM_CLASSES)
    valid_b = finite & positive & cls_ok
    valid_f = valid_b.astype(jnp.float32)
    count = jnp.sum(valid_f)
    denom = jnp.maximum(count, 1.0)

    gxy = flat[:, 1:3]
    gwh = flat[:, 3:5]
    gxy_int = gxy.astype(jnp.int32)                 # trunc toward zero (== .long())
    frac = gxy - gxy_int.astype(jnp.float32)

    # target box rows (frac_x, frac_y, w, h) — consumed as xyxy by the CIoU,
    # exactly like the PyTorch reference.
    tbox_r = jnp.stack([frac[:, 0], frac[:, 1], gwh[:, 0], gwh[:, 1]], axis=0)  # [4, n]
    cls_idx = jnp.clip(flat[:, 0].astype(jnp.int32), 0, NUM_CLASSES - 1)
    tcls_r = (jnp.arange(NUM_CLASSES, dtype=jnp.int32)[:, None]
              == cls_idx[None, :]).astype(jnp.float32)                          # [nc, n]

    preds5 = []
    boxes_cols, cls_cols, misc_cols = [], [], []
    obj_weights = []
    cls_pad = jnp.zeros((_CLS_HALF - NUM_CLASSES, n), jnp.float32)
    misc_pad = jnp.zeros((_MISC_ROWS - 5, n), jnp.float32)

    for i, pred in enumerate(predictions):
        b, _, gh, gw = pred.shape
        preds5.append(pred.reshape(b, NA, 5 + NUM_CLASSES, gh, gw))   # free view

        # anchor assignment (argmax of min wh/anchor ratio metric)
        anchor_vec = ANCHORS[i]                               # [na, 2]
        ratio = gwh[:, None, :] / anchor_vec[None]            # [n, na, 2]
        metric = jnp.min(jnp.minimum(ratio, 1.0 / ratio), axis=2)
        a_idx = jnp.argmax(metric, axis=1).astype(jnp.int32)

        gxi = jnp.clip(gxy_int[:, 0], 0, gw - 1)
        gyi = jnp.clip(gxy_int[:, 1], 0, gh - 1)
        b_idx = jnp.clip(batch_idx_all, 0, b - 1)

        # TODO(synk): this tiny (5+nc)-channel gather stays in XLA; a Pallas
        # scalar-prefetch gather only pays off at much larger target counts.
        ch_idx = (a_idx[:, None] * (5 + NUM_CLASSES)
                  + jnp.arange(5 + NUM_CLASSES, dtype=jnp.int32)[None, :])
        gathered = pred[b_idx[:, None], ch_idx, gyi[:, None], gxi[:, None]]  # [n, 5+nc]
        pbox_r = gathered[:, :4].T                                           # [4, n]
        pobj_r = gathered[:, 4]                                              # [n]
        pcls_r = gathered[:, 5:].T                                           # [nc, n]

        # TODO(synk): arctan (CIoU aspect-ratio term) is precomputed in plain
        # JAX instead of inside the kernel (atan lowering in Mosaic not relied on).
        w1 = pbox_r[2] - pbox_r[0]
        h1 = pbox_r[3] - pbox_r[1]
        w2 = tbox_r[2] - tbox_r[0]
        h2 = tbox_r[3] - tbox_r[1]
        dtheta = (jnp.arctan(w1 / (h1 + EPS_CIOU))
                  - jnp.arctan(w2 / (h2 + EPS_CIOU)))

        # duplicate-cell dedup, O(n log n): the reference scatters tobj = 1, so
        # a cell hit by several targets gets the "-x" correction exactly once.
        lin = ((b_idx * NA + a_idx) * gh + gyi) * gw + gxi
        key = jnp.where(valid_b, lin, -1)
        perm = jnp.argsort(key)
        sk = key[perm]
        first = jnp.concatenate(
            [jnp.ones((1,), dtype=bool), sk[1:] != sk[:-1]])
        keep = jnp.zeros((n,), dtype=bool).at[perm].set(first & (sk >= 0))

        numel_i = b * NA * gh * gw
        wobj_scale = OBJ_WEIGHT * float(BALANCE[i]) / (nl * numel_i)
        wbox_row = valid_f * (BOX_WEIGHT / nl) / denom
        wcls_row = valid_f * (CLS_WEIGHT / (nl * NUM_CLASSES)) / denom
        wobj_row = keep.astype(jnp.float32) * wobj_scale

        boxes_cols.append(jnp.concatenate([pbox_r, tbox_r], axis=0))          # [8, n]
        cls_cols.append(jnp.concatenate(
            [pcls_r, cls_pad, tcls_r, cls_pad], axis=0))                      # [16, n]
        misc_cols.append(jnp.concatenate(
            [jnp.stack([dtheta, wbox_row, wcls_row, pobj_r, wobj_row], axis=0),
             misc_pad], axis=0))                                              # [8, n]
        obj_weights.append(wobj_scale)

    boxes_all = jnp.concatenate(boxes_cols, axis=1)
    cls_all = jnp.concatenate(cls_cols, axis=1)
    misc_all = jnp.concatenate(misc_cols, axis=1)
    pad = (-boxes_all.shape[1]) % 128
    if pad:
        boxes_all = jnp.pad(boxes_all, ((0, 0), (0, pad)))
        cls_all = jnp.pad(cls_all, ((0, 0), (0, pad)))
        misc_all = jnp.pad(misc_all, ((0, 0), (0, pad)))
    np_cols = boxes_all.shape[1]

    # ---- single fused pallas_call -----------------------------------------
    in_specs = []
    for p5 in preds5:
        _, na_, _, gh, gw = p5.shape
        # obj channel (index 4) only; gh/gw are full dims -> (8,128) rule ok.
        in_specs.append(
            pl.BlockSpec((None, na_, None, gh, gw),
                         lambda bb: (bb, 0, 4, 0, 0)))
    in_specs += [
        pl.BlockSpec((8, np_cols), lambda bb: (0, 0)),
        pl.BlockSpec((2 * _CLS_HALF, np_cols), lambda bb: (0, 0)),
        pl.BlockSpec((_MISC_ROWS, np_cols), lambda bb: (0, 0)),
    ]

    out = pl.pallas_call(
        _make_fused_kernel(nl, obj_weights),
        out_shape=jax.ShapeDtypeStruct((B, 1, _OUT_LANES), jnp.float32),
        grid=(B,),
        in_specs=in_specs,
        out_specs=pl.BlockSpec((1, 1, _OUT_LANES), lambda bb: (bb, 0, 0)),
        compiler_params=pltpu.CompilerParams(
            dimension_semantics=("parallel",)),
    )(*preds5, boxes_all, cls_all, misc_all)

    lobj = jnp.sum(out[:, 0, 0]) + out[0, 0, 3]   # base softplus sum + "-x" corr
    lbox = out[0, 0, 1]
    lcls = out[0, 0, 2]
    loss = lbox + lobj + lcls
    return loss, {"box_loss": lbox, "obj_loss": lobj, "cls_loss": lcls}


if __name__ == "__main__":
    key = jax.random.PRNGKey(0)
    k1, k2, k3, k4, k5, k6 = jax.random.split(key, 6)

    B = 2
    CH = NA * (5 + NUM_CLASSES)          # 36
    predictions = [
        jax.random.normal(k1, (B, CH, 16, 16), jnp.float32),   # P3
        jax.random.normal(k2, (B, CH, 8, 8), jnp.float32),     # P4
        jax.random.normal(k3, (B, CH, 4, 4), jnp.float32),     # P5
    ]

    # targets: [num_targets, 6] rows = (class, x, y, w, h, 0)
    n_t = 5
    cls = jax.random.randint(k4, (n_t, 1), 0, NUM_CLASSES).astype(jnp.float32)
    xy = jax.random.uniform(k5, (n_t, 2), minval=0.5, maxval=3.5)
    wh = jax.random.uniform(k6, (n_t, 2), minval=5.0, maxval=60.0)
    targets = jnp.concatenate([cls, xy, wh, jnp.zeros((n_t, 1))], axis=1)

    loss_fn = jax.jit(yolo_loss)
    loss, items = loss_fn(predictions, targets)
    jax.block_until_ready(loss)
    for v in items.values():
        jax.block_until_ready(v)
    print("KERNEL_OK")
</pallas_src>

<mosaic_0001>
module attributes {stable_mosaic.version = 11 : i64} {
  func.func @kernel(%arg0: i32, %arg1: memref<1x3x1x16x16xf32, #tpu.memory_space<vmem>>, %arg2: memref<1x3x1x8x8xf32, #tpu.memory_space<vmem>>, %arg3: memref<1x3x1x4x4xf32, #tpu.memory_space<vmem>>, %arg4: memref<8x128xf32, #tpu.memory_space<vmem>>, %arg5: memref<16x128xf32, #tpu.memory_space<vmem>>, %arg6: memref<8x128xf32, #tpu.memory_space<vmem>>, %arg7: memref<1x1x128xf32, #tpu.memory_space<vmem>>) attributes {dimension_semantics = [#tpu.dimension_semantics<parallel>], iteration_bounds = array<i64: 2>, scalar_prefetch = 0 : i64, scratch_operands = 0 : i64, tpu.core_type = #tpu.core_type<tc>, window_params = [{transform_indices = @transform_0, window_bounds = array<i64: 1, 3, 1, 16, 16>}, {transform_indices = @transform_1, window_bounds = array<i64: 1, 3, 1, 8, 8>}, {transform_indices = @transform_2, window_bounds = array<i64: 1, 3, 1, 4, 4>}, {pipeline_mode = #tpu.pipeline_mode<synchronous>, transform_indices = @transform_3, window_bounds = array<i64: 8, 128>}, {pipeline_mode = #tpu.pipeline_mode<synchronous>, transform_indices = @transform_4, window_bounds = array<i64: 16, 128>}, {pipeline_mode = #tpu.pipeline_mode<synchronous>, transform_indices = @transform_5, window_bounds = array<i64: 8, 128>}, {transform_indices = @transform_6, window_bounds = array<i64: 1, 1, 128>}]} {
    %c0 = arith.constant 0 : index
    %c0_0 = arith.constant 0 : index
    %c0_1 = arith.constant 0 : index
    %c0_2 = arith.constant 0 : index
    %c0_3 = arith.constant 0 : index
    %0 = vector.load %arg1[%c0, %c0_0, %c0_1, %c0_2, %c0_3] : memref<1x3x1x16x16xf32, #tpu.memory_space<vmem>>, vector<1x3x1x16x16xf32>
    %1 = vector.shape_cast %0 : vector<1x3x1x16x16xf32> to vector<3x16x16xf32>
    %cst = arith.constant 0.000000e+00 : f32
    %2 = vector.broadcast %cst : f32 to vector<3x16x16xf32>
    %3 = arith.maximumf %1, %2 : vector<3x16x16xf32>
    %4 = math.absf %1 : vector<3x16x16xf32>
    %cst_4 = arith.constant 0.000000e+00 : f32
    %5 = vector.broadcast %cst_4 : f32 to vector<3x16x16xf32>
    %6 = arith.subf %5, %4 : vector<3x16x16xf32>
    %7 = math.exp %6 : vector<3x16x16xf32>
    %8 = math.log1p %7 : vector<3x16x16xf32>
    %9 = arith.addf %3, %8 : vector<3x16x16xf32>
    %10 = vector.shape_cast %9 : vector<3x16x16xf32> to vector<1x3x16x16xf32>
    %cst_5 = arith.constant dense<0.000000e+00> : vector<1xf32>
    %11 = vector.multi_reduction <add>, %10, %cst_5 [1, 2, 3] : vector<1x3x16x16xf32> to vector<1xf32>
    %12 = vector.shape_cast %11 : vector<1xf32> to vector<1x1x1x1xf32>
    %13 = vector.extract %12[0, 0, 0, 0] : f32 from vector<1x1x1x1xf32>
    %cst_6 = arith.constant 8.68055562E-4 : f32
    %14 = arith.mulf %cst_6, %13 : f32
    %cst_7 = arith.constant 0.000000e+00 : f32
    %15 = arith.addf %cst_7, %14 : f32
    %c0_8 = arith.constant 0 : index
    %c0_9 = arith.constant 0 : index
    %c0_10 = arith.constant 0 : index
    %c0_11 = arith.constant 0 : index
    %c0_12 = arith.constant 0 : index
    %16 = vector.load %arg2[%c0_8, %c0_9, %c0_10, %c0_11, %c0_12] : memref<1x3x1x8x8xf32, #tpu.memory_space<vmem>>, vector<1x3x1x8x8xf32>
    %17 = vector.shape_cast %16 : vector<1x3x1x8x8xf32> to vector<3x8x8xf32>
    %cst_13 = arith.constant 0.000000e+00 : f32
    %18 = vector.broadcast %cst_13 : f32 to vector<3x8x8xf32>
    %19 = arith.maximumf %17, %18 : vector<3x8x8xf32>
    %20 = math.absf %17 : vector<3x8x8xf32>
    %cst_14 = arith.constant 0.000000e+00 : f32
    %21 = vector.broadcast %cst_14 : f32 to vector<3x8x8xf32>
    %22 = arith.subf %21, %20 : vector<3x8x8xf32>
    %23 = math.exp %22 : vector<3x8x8xf32>
    %24 = math.log1p %23 : vector<3x8x8xf32>
    %25 = arith.addf %19, %24 : vector<3x8x8xf32>
    %26 = vector.shape_cast %25 : vector<3x8x8xf32> to vector<1x3x8x8xf32>
    %cst_15 = arith.constant dense<0.000000e+00> : vector<1xf32>
    %27 = vector.multi_reduction <add>, %26, %cst_15 [1, 2, 3] : vector<1x3x8x8xf32> to vector<1xf32>
    %28 = vector.shape_cast %27 : vector<1xf32> to vector<1x1x1x1xf32>
    %29 = vector.extract %28[0, 0, 0, 0] : f32 from vector<1x1x1x1xf32>
    %cst_16 = arith.constant 8.68055562E-4 : f32
    %30 = arith.mulf %cst_16, %29 : f32
    %31 = arith.addf %15, %30 : f32
    %c0_17 = arith.constant 0 : index
    %c0_18 = arith.constant 0 : index
    %c0_19 = arith.constant 0 : index
    %c0_20 = arith.constant 0 : index
    %c0_21 = arith.constant 0 : index
    %32 = vector.load %arg3[%c0_17, %c0_18, %c0_19, %c0_20, %c0_21] : memref<1x3x1x4x4xf32, #tpu.memory_space<vmem>>, vector<1x3x1x4x4xf32>
    %33 = vector.shape_cast %32 : vector<1x3x1x4x4xf32> to vector<3x4x4xf32>
    %cst_22 = arith.constant 0.000000e+00 : f32
    %34 = vector.broadcast %cst_22 : f32 to vector<3x4x4xf32>
    %35 = arith.maximumf %33, %34 : vector<3x4x4xf32>
    %36 = math.absf %33 : vector<3x4x4xf32>
    %cst_23 = arith.constant 0.000000e+00 : f32
    %37 = vector.broadcast %cst_23 : f32 to vector<3x4x4xf32>
    %38 = arith.subf %37, %36 : vector<3x4x4xf32>
    %39 = math.exp %38 : vector<3x4x4xf32>
    %40 = math.log1p %39 : vector<3x4x4xf32>
    %41 = arith.addf %35, %40 : vector<3x4x4xf32>
    %42 = vector.shape_cast %41 : vector<3x4x4xf32> to vector<1x3x4x4xf32>
    %cst_24 = arith.constant dense<0.000000e+00> : vector<1xf32>
    %43 = vector.multi_reduction <add>, %42, %cst_24 [1, 2, 3] : vector<1x3x4x4xf32> to vector<1xf32>
    %44 = vector.shape_cast %43 : vector<1xf32> to vector<1x1x1x1xf32>
    %45 = vector.extract %44[0, 0, 0, 0] : f32 from vector<1x1x1x1xf32>
    %cst_25 = arith.constant 0.00138888892 : f32
    %46 = arith.mulf %cst_25, %45 : f32
    %47 = arith.addf %31, %46 : f32
    %48 = tpu.iota {dimensions = array<i32: 2>} : vector<1x1x128xi32>
    %c0_i32 = arith.constant 0 : i32
    %49 = vector.broadcast %c0_i32 : i32 to vector<1x1x128xi32>
    %50 = arith.cmpi eq, %48, %49 : vector<1x1x128xi32>
    %cst_26 = arith.constant 0.000000e+00 : f32
    %51 = vector.broadcast %47 : f32 to vector<1x1x128xf32>
    %52 = vector.broadcast %cst_26 : f32 to vector<1x1x128xf32>
    %53 = arith.select %50, %51, %52 : vector<1x1x128xi1>, vector<1x1x128xf32>
    %c0_27 = arith.constant 0 : index
    %c0_28 = arith.constant 0 : index
    %c0_29 = arith.constant 0 : index
    %54 = vector.load %arg7[%c0_27, %c0_28, %c0_29] : memref<1x1x128xf32, #tpu.memory_space<vmem>>, vector<1x1x128xf32>
    tpu.vector_store %arg7[%c0_27, %c0_28, %c0_29], %53 {strides = array<i32>} : memref<1x1x128xf32, #tpu.memory_space<vmem>>, vector<1x1x128xf32>,
    %c0_i32_30 = arith.constant 0 : i32
    %55 = arith.cmpi eq, %arg0, %c0_i32_30 : i32
    %56 = arith.extui %55 : i1 to i32
    %c0_i32_31 = arith.constant 0 : i32
    %57 = arith.cmpi ne, %56, %c0_i32_31 : i32
    scf.if %57 {
      %c0_32 = arith.constant 0 : index
      %c0_33 = arith.constant 0 : index
      %58 = vector.load %arg4[%c0_32, %c0_33] : memref<8x128xf32, #tpu.memory_space<vmem>>, vector<8x128xf32>
      %59 = vector.extract_strided_slice %58 {offsets = [0, 0], sizes = [4, 128], strides = [1, 1]} : vector<8x128xf32> to vector<4x128xf32>
      %60 = vector.extract_strided_slice %58 {offsets = [4, 0], sizes = [4, 128], strides = [1, 1]} : vector<8x128xf32> to vector<4x128xf32>
      %61 = arith.maximumf %59, %60 : vector<4x128xf32>
      %62 = arith.minimumf %59, %60 : vector<4x128xf32>
      %63 = vector.extract_strided_slice %59 {offsets = [0, 0], sizes = [1, 128], strides = [1, 1]} : vector<4x128xf32> to vector<1x128xf32>
      %64 = vector.extract_strided_slice %59 {offsets = [1, 0], sizes = [1, 128], strides = [1, 1]} : vector<4x128xf32> to vector<1x128xf32>
      %65 = vector.extract_strided_slice %59 {offsets = [2, 0], sizes = [1, 128], strides = [1, 1]} : vector<4x128xf32> to vector<1x128xf32>
      %66 = vector.extract_strided_slice %59 {offsets = [3, 0], sizes = [1, 128], strides = [1, 1]} : vector<4x128xf32> to vector<1x128xf32>
      %67 = vector.extract_strided_slice %60 {offsets = [0, 0], sizes = [1, 128], strides = [1, 1]} : vector<4x128xf32> to vector<1x128xf32>
      %68 = vector.extract_strided_slice %60 {offsets = [1, 0], sizes = [1, 128], strides = [1, 1]} : vector<4x128xf32> to vector<1x128xf32>
      %69 = vector.extract_strided_slice %60 {offsets = [2, 0], sizes = [1, 128], strides = [1, 1]} : vector<4x128xf32> to vector<1x128xf32>
      %70 = vector.extract_strided_slice %60 {offsets = [3, 0], sizes = [1, 128], strides = [1, 1]} : vector<4x128xf32> to vector<1x128xf32>
      %71 = vector.extract_strided_slice %62 {offsets = [2, 0], sizes = [1, 128], strides = [1, 1]} : vector<4x128xf32> to vector<1x128xf32>
      %72 = vector.extract_strided_slice %61 {offsets = [0, 0], sizes = [1, 128], strides = [1, 1]} : vector<4x128xf32> to vector<1x128xf32>
      %73 = arith.subf %71, %72 : vector<1x128xf32>
      %cst_34 = arith.constant 0.000000e+00 : f32
      %74 = vector.broadcast %cst_34 : f32 to vector<1x128xf32>
      %75 = arith.maximumf %73, %74 : vector<1x128xf32>
      %76 = vector.extract_strided_slice %62 {offsets = [3, 0], sizes = [1, 128], strides = [1, 1]} : vector<4x128xf32> to vector<1x128xf32>
      %77 = vector.extract_strided_slice %61 {offsets = [1, 0], sizes = [1, 128], strides = [1, 1]} : vector<4x128xf32> to vector<1x128xf32>
      %78 = arith.subf %76, %77 : vector<1x128xf32>
      %cst_35 = arith.constant 0.000000e+00 : f32
      %79 = vector.broadcast %cst_35 : f32 to vector<1x128xf32>
      %80 = arith.maximumf %78, %79 : vector<1x128xf32>
      %81 = arith.mulf %75, %80 : vector<1x128xf32>
      %82 = arith.subf %65, %63 : vector<1x128xf32>
      %83 = arith.subf %66, %64 : vector<1x128xf32>
      %84 = arith.mulf %82, %83 : vector<1x128xf32>
      %85 = arith.subf %69, %67 : vector<1x128xf32>
      %86 = arith.subf %70, %68 : vector<1x128xf32>
      %87 = arith.mulf %85, %86 : vector<1x128xf32>
      %88 = arith.addf %84, %87 : vector<1x128xf32>
      %89 = arith.subf %88, %81 : vector<1x128xf32>
      %cst_36 = arith.constant 1.000000e-07 : f32
      %90 = vector.broadcast %cst_36 : f32 to vector<1x128xf32>
      %91 = arith.addf %89, %90 : vector<1x128xf32>
      %92 = arith.divf %81, %91 : vector<1x128xf32>
      %93 = arith.addf %63, %65 : vector<1x128xf32>
      %94 = arith.addf %67, %69 : vector<1x128xf32>
      %95 = arith.subf %93, %94 : vector<1x128xf32>
      %cst_37 = arith.constant 5.000000e-01 : f32
      %96 = vector.broadcast %cst_37 : f32 to vector<1x128xf32>
      %97 = arith.mulf %95, %96 : vector<1x128xf32>
      %98 = arith.mulf %97, %97 : vector<1x128xf32>
      %99 = arith.addf %64, %66 : vector<1x128xf32>
      %100 = arith.addf %68, %70 : vector<1x128xf32>
      %101 = arith.subf %99, %100 : vector<1x128xf32>
      %cst_38 = arith.constant 5.000000e-01 : f32
      %102 = vector.broadcast %cst_38 : f32 to vector<1x128xf32>
      %103 = arith.mulf %101, %102 : vector<1x128xf32>
      %104 = arith.mulf %103, %103 : vector<1x128xf32>
      %105 = arith.addf %98, %104 : vector<1x128xf32>
      %106 = vector.extract_strided_slice %61 {offsets = [2, 0], sizes = [1, 128], strides = [1, 1]} : vector<4x128xf32> to vector<1x128xf32>
      %107 = vector.extract_strided_slice %62 {offsets = [0, 0], sizes = [1, 128], strides = [1, 1]} : vector<4x128xf32> to vector<1x128xf32>
      %108 = arith.subf %106, %107 : vector<1x128xf32>
      %109 = arith.mulf %108, %108 : vector<1x128xf32>
      %110 = vector.extract_strided_slice %61 {offsets = [3, 0], sizes = [1, 128], strides = [1, 1]} : vector<4x128xf32> to vector<1x128xf32>
      %111 = vector.extract_strided_slice %62 {offsets = [1, 0], sizes = [1, 128], strides = [1, 1]} : vector<4x128xf32> to vector<1x128xf32>
      %112 = arith.subf %110, %111 : vector<1x128xf32>
      %113 = arith.mulf %112, %112 : vector<1x128xf32>
      %114 = arith.addf %109, %113 : vector<1x128xf32>
      %cst_39 = arith.constant 1.000000e-07 : f32
      %115 = vector.broadcast %cst_39 : f32 to vector<1x128xf32>
      %116 = arith.addf %114, %115 : vector<1x128xf32>
      %c0_40 = arith.constant 0 : index
      %c0_41 = arith.constant 0 : index
      %117 = vector.load %arg6[%c0_40, %c0_41] : memref<8x128xf32, #tpu.memory_space<vmem>>, vector<8x128xf32>
      %118 = vector.extract_strided_slice %117 {offsets = [0, 0], sizes = [1, 128], strides = [1, 1]} : vector<8x128xf32> to vector<1x128xf32>
      %cst_42 = arith.constant 0.405284733 : f32
      %119 = vector.broadcast %cst_42 : f32 to vector<1x128xf32>
      %120 = arith.mulf %119, %118 : vector<1x128xf32>
      %121 = arith.mulf %120, %118 : vector<1x128xf32>
      %cst_43 = arith.constant 1.000000e+00 : f32
      %122 = vector.broadcast %cst_43 : f32 to vector<1x128xf32>
      %123 = arith.subf %122, %92 : vector<1x128xf32>
      %124 = arith.addf %123, %121 : vector<1x128xf32>
      %cst_44 = arith.constant 1.000000e-07 : f32
      %125 = vector.broadcast %cst_44 : f32 to vector<1x128xf32>
      %126 = arith.addf %124, %125 : vector<1x128xf32>
      %127 = arith.divf %121, %126 : vector<1x128xf32>
      %128 = arith.divf %105, %116 : vector<1x128xf32>
      %129 = arith.mulf %127, %121 : vector<1x128xf32>
      %130 = arith.addf %128, %129 : vector<1x128xf32>
      %131 = arith.subf %92, %130 : vector<1x128xf32>
      %cst_45 = arith.constant 1.000000e+00 : f32
      %132 = vector.broadcast %cst_45 : f32 to vector<1x128xf32>
      %133 = arith.subf %132, %131 : vector<1x128xf32>
      %134 = vector.extract_strided_slice %117 {offsets = [1, 0], sizes = [1, 128], strides = [1, 1]} : vector<8x128xf32> to vector<1x128xf32>
      %135 = arith.mulf %133, %134 : vector<1x128xf32>
      %136 = vector.shape_cast %135 : vector<1x128xf32> to vector<1x1x128xf32>
      %cst_46 = arith.constant dense<0.000000e+00> : vector<1xf32>
      %137 = vector.multi_reduction <add>, %136, %cst_46 [1, 2] : vector<1x1x128xf32> to vector<1xf32>
      %138 = vector.shape_cast %137 : vector<1xf32> to vector<1x1x1xf32>
      %139 = vector.extract %138[0, 0, 0] : f32 from vector<1x1x1xf32>
      %c0_47 = arith.constant 0 : index
      %c0_48 = arith.constant 0 : index
      %140 = vector.load %arg5[%c0_47, %c0_48] : memref<16x128xf32, #tpu.memory_space<vmem>>, vector<16x128xf32>
      %141 = vector.extract_strided_slice %140 {offsets = [0, 0], sizes = [7, 128], strides = [1, 1]} : vector<16x128xf32> to vector<7x128xf32>
      %142 = vector.extract_strided_slice %140 {offsets = [8, 0], sizes = [7, 128], strides = [1, 1]} : vector<16x128xf32> to vector<7x128xf32>
      %cst_49 = arith.constant 0.000000e+00 : f32
      %143 = vector.broadcast %cst_49 : f32 to vector<7x128xf32>
      %144 = arith.maximumf %141, %143 : vector<7x128xf32>
      %145 = arith.mulf %141, %142 : vector<7x128xf32>
      %146 = arith.subf %144, %145 : vector<7x128xf32>
      %147 = math.absf %141 : vector<7x128xf32>
      %cst_50 = arith.constant 0.000000e+00 : f32
      %148 = vector.broadcast %cst_50 : f32 to vector<7x128xf32>
      %149 = arith.subf %148, %147 : vector<7x128xf32>
      %150 = math.exp %149 : vector<7x128xf32>
      %151 = math.log1p %150 : vector<7x128xf32>
      %152 = arith.addf %146, %151 : vector<7x128xf32>
      %153 = vector.extract_strided_slice %117 {offsets = [2, 0], sizes = [1, 128], strides = [1, 1]} : vector<8x128xf32> to vector<1x128xf32>
      %154 = vector.broadcast %153 : vector<1x128xf32> to vector<7x128xf32>
      %155 = arith.mulf %152, %154 : vector<7x128xf32>
      %156 = vector.shape_cast %155 : vector<7x128xf32> to vector<1x7x128xf32>
      %cst_51 = arith.constant dense<0.000000e+00> : vector<1xf32>
      %157 = vector.multi_reduction <add>, %156, %cst_51 [1, 2] : vector<1x7x128xf32> to vector<1xf32>
      %158 = vector.shape_cast %157 : vector<1xf32> to vector<1x1x1xf32>
      %159 = vector.extract %158[0, 0, 0] : f32 from vector<1x1x1xf32>
      %160 = vector.extract_strided_slice %117 {offsets = [3, 0], sizes = [1, 128], strides = [1, 1]} : vector<8x128xf32> to vector<1x128xf32>
      %cst_52 = arith.constant 0.000000e+00 : f32
      %161 = vector.broadcast %cst_52 : f32 to vector<1x128xf32>
      %162 = arith.subf %161, %160 : vector<1x128xf32>
      %163 = vector.extract_strided_slice %117 {offsets = [4, 0], sizes = [1, 128], strides = [1, 1]} : vector<8x128xf32> to vector<1x128xf32>
      %164 = arith.mulf %162, %163 : vector<1x128xf32>
      %165 = vector.shape_cast %164 : vector<1x128xf32> to vector<1x1x128xf32>
      %cst_53 = arith.constant dense<0.000000e+00> : vector<1xf32>
      %166 = vector.multi_reduction <add>, %165, %cst_53 [1, 2] : vector<1x1x128xf32> to vector<1xf32>
      %167 = vector.shape_cast %166 : vector<1xf32> to vector<1x1x1xf32>
      %168 = vector.extract %167[0, 0, 0] : f32 from vector<1x1x1xf32>
      %c0_54 = arith.constant 0 : index
      %c0_55 = arith.constant 0 : index
      %c0_56 = arith.constant 0 : index
      %169 = vector.load %arg7[%c0_54, %c0_55, %c0_56] : memref<1x1x128xf32, #tpu.memory_space<vmem>>, vector<1x1x128xf32>
      %c1_i32 = arith.constant 1 : i32
      %170 = vector.broadcast %c1_i32 : i32 to vector<1x1x128xi32>
      %171 = arith.cmpi eq, %48, %170 : vector<1x1x128xi32>
      %cst_57 = arith.constant 0.000000e+00 : f32
      %172 = vector.broadcast %139 : f32 to vector<1x1x128xf32>
      %173 = vector.broadcast %cst_57 : f32 to vector<1x1x128xf32>
      %174 = arith.select %171, %172, %173 : vector<1x1x128xi1>, vector<1x1x128xf32>
      %c2_i32 = arith.constant 2 : i32
      %175 = vector.broadcast %c2_i32 : i32 to vector<1x1x128xi32>
      %176 = arith.cmpi eq, %48, %175 : vector<1x1x128xi32>
      %cst_58 = arith.constant 0.000000e+00 : f32
      %177 = vector.broadcast %159 : f32 to vector<1x1x128xf32>
      %178 = vector.broadcast %cst_58 : f32 to vector<1x1x128xf32>
      %179 = arith.select %176, %177, %178 : vector<1x1x128xi1>, vector<1x1x128xf32>
      %180 = arith.addf %174, %179 : vector<1x1x128xf32>
      %c3_i32 = arith.constant 3 : i32
      %181 = vector.broadcast %c3_i32 : i32 to vector<1x1x128xi32>
      %182 = arith.cmpi eq, %48, %181 : vector<1x1x128xi32>
      %cst_59 = arith.constant 0.000000e+00 : f32
      %183 = vector.broadcast %168 : f32 to vector<1x1x128xf32>
      %184 = vector.broadcast %cst_59 : f32 to vector<1x1x128xf32>
      %185 = arith.select %182, %183, %184 : vector<1x1x128xi1>, vector<1x1x128xf32>
      %186 = arith.addf %180, %185 : vector<1x1x128xf32>
      %187 = arith.addf %169, %186 : vector<1x1x128xf32>
      %c0_60 = arith.constant 0 : index
      %c0_61 = arith.constant 0 : index
      %c0_62 = arith.constant 0 : index
      %188 = vector.load %arg7[%c0_60, %c0_61, %c0_62] : memref<1x1x128xf32, #tpu.memory_space<vmem>>, vector<1x1x128xf32>
      tpu.vector_store %arg7[%c0_60, %c0_61, %c0_62], %187 {strides = array<i32>} : memref<1x1x128xf32, #tpu.memory_space<vmem>>, vector<1x1x128xf32>,
    } else {
    }
    return
  }
  func.func @transform_0(%arg0: i32) -> (i32, i32, i32, i32, i32) {
    %c0_i32 = arith.constant 0 : i32
    %c4_i32 = arith.constant 4 : i32
    %c0_i32_0 = arith.constant 0 : i32
    %c0_i32_1 = arith.constant 0 : i32
    %c0_i32_2 = arith.constant 0 : i32
    return %arg0, %c0_i32, %c4_i32, %c0_i32_0, %c0_i32_1 : i32, i32, i32, i32, i32
  }
  func.func @transform_1(%arg0: i32) -> (i32, i32, i32, i32, i32) {
    %c0_i32 = arith.constant 0 : i32
    %c4_i32 = arith.constant 4 : i32
    %c0_i32_0 = arith.constant 0 : i32
    %c0_i32_1 = arith.constant 0 : i32
    %c0_i32_2 = arith.constant 0 : i32
    return %arg0, %c0_i32, %c4_i32, %c0_i32_0, %c0_i32_1 : i32, i32, i32, i32, i32
  }
  func.func @transform_2(%arg0: i32) -> (i32, i32, i32, i32, i32) {
    %c0_i32 = arith.constant 0 : i32
    %c4_i32 = arith.constant 4 : i32
    %c0_i32_0 = arith.constant 0 : i32
    %c0_i32_1 = arith.constant 0 : i32
    %c0_i32_2 = arith.constant 0 : i32
    return %arg0, %c0_i32, %c4_i32, %c0_i32_0, %c0_i32_1 : i32, i32, i32, i32, i32
  }
  func.func @transform_3(%arg0: i32) -> (i32, i32) {
    %c0_i32 = arith.constant 0 : i32
    %c0_i32_0 = arith.constant 0 : i32
    %c0_i32_1 = arith.constant 0 : i32
    return %c0_i32, %c0_i32_0 : i32, i32
  }
  func.func @transform_4(%arg0: i32) -> (i32, i32) {
    %c0_i32 = arith.constant 0 : i32
    %c0_i32_0 = arith.constant 0 : i32
    %c0_i32_1 = arith.constant 0 : i32
    return %c0_i32, %c0_i32_0 : i32, i32
  }
  func.func @transform_5(%arg0: i32) -> (i32, i32) {
    %c0_i32 = arith.constant 0 : i32
    %c0_i32_0 = arith.constant 0 : i32
    %c0_i32_1 = arith.constant 0 : i32
    return %c0_i32, %c0_i32_0 : i32, i32
  }
  func.func @transform_6(%arg0: i32) -> (i32, i32, i32) {
    %c0_i32 = arith.constant 0 : i32
    %c0_i32_0 = arith.constant 0 : i32
    %c0_i32_1 = arith.constant 0 : i32
    return %arg0, %c0_i32, %c0_i32_0 : i32, i32, i32
  }
}

</mosaic_0001>

<llo_original>
// kernel: yolo_loss.1
$region0: #{yolo_loss.1}
  #allocation0 [shape = 'u32[]', space=smem, size = 0x4, offset = 0x4, fixed_abs, tag = 'smem constant byte address 0x4 - core index']
  #allocation1 [shape = 'u32[72,128]{1,0:T(1,128)}', space=vmem, size = 0x9000, scoped, tag = 'internal scratch']
  %s0 = inlined_call_operand.vmem [shape: f32[2,3,12,16,16], index: 0, kind: input, shape index: {}]
  %s1 = inlined_call_operand.vmem [shape: f32[2,3,12,8,8], index: 1, kind: input, shape index: {}]
  %s2 = inlined_call_operand.vmem [shape: f32[2,3,12,4,4], index: 2, kind: input, shape index: {}]
  %s3 = inlined_call_operand.vmem [shape: f32[8,128], index: 3, kind: input, shape index: {}]
  %s4 = inlined_call_operand.vmem [shape: f32[16,128], index: 4, kind: input, shape index: {}]
  %s5 = inlined_call_operand.vmem [shape: f32[8,128], index: 5, kind: input, shape index: {}]
  %s6 = inlined_call_operand.vmem [shape: f32[2,1,128], index: 6, kind: output, shape index: {}]
  %s7 = sld [smem:[#allocation0]]
  $region178: #{yolo_loss.1} parent=0
    _
  %s9 = ssub.s32 1, %s7
  %s10 = scalar_select 0, %s9, %s7
  $region1: #{yolo_loss.1} parent=0
    #allocation2 [shape = 'u8[49152]{0}', space=vmem, size = 0xc000, scoped, tag = 'input window, operand 0']
    #allocation3 [shape = 'u8[24576]{0}', space=vmem, size = 0x6000, scoped, tag = 'input window, operand 1']
    #allocation4 [shape = 'u8[12288]{0}', space=vmem, size = 0x3000, scoped, tag = 'input window, operand 2']
    loop: start=0, step=1, limit=4
    $region2: #{yolo_loss.1} parent=1 // loop_pre_header
      _
    $region3: #{yolo_loss.1} parent=1 // loop_header
      %s12 = sphi 0, %s16
      %p13 = scmp.ge.s32.totalorder %s12, 4
      %s22 = sphi 0, %s24
      %s25 = sphi 0, %s22
      %s26 = sphi 0, %s25
      %s42 = sphi 0, %s26
      %s48 = sphi 0, %s50
      %s51 = sphi 0, %s48
      %s52 = sphi 0, %s51
      %s68 = sphi 0, %s52
      %s74 = sphi 0, %s76
      %s77 = sphi 0, %s74
      %s78 = sphi 0, %s77
      %s94 = sphi 0, %s78
      %s98 = sphi 0, %s98
      %s100 = sphi 0, %s98
      %s101 = sphi 0, %s100
      %s115 = sphi 0, %s101
      %s119 = sphi 0, %s119
      %s121 = sphi 0, %s119
      %s122 = sphi 0, %s121
      %s136 = sphi 0, %s122
      %s140 = sphi 0, %s140
      %s142 = sphi 0, %s140
      %s143 = sphi 0, %s142
      %s157 = sphi 0, %s143
      %s163 = sphi 0, %s165
      %s166 = sphi 0, %s163
      %s167 = sphi 0, %s166
      %s183 = sphi 0, %s167
    $region4: #{yolo_loss.1} parent=1 // loop_header_branch
      %15 = sbr.rel (%p13) target = $region8
    $region5: #{yolo_loss.1} parent=1 // loop_body
      %s17 = ssub.s32 %s12, 1
      %s18 = ssub.s32 %s12, 2
      %s19 = sadd.s32 %s12, 1
      %s20 = ssub.s32 %s12, %s19
      %p21 = scmp.eq.s32.totalorder %s20, 0
      %s23 = sadd.s32 %s22, 1
      %s24 = scalar_select %p21, %s22, %s23
      %p27 = pneg %p21
      %p28 = scmp.eq.s32.totalorder %s12, 1
      %p29 = por %p27, %p28
      %p30 = scmp.ne.s32.totalorder %s22, %s25
      %p31 = scmp.eq.s32.totalorder %s12, 0
      %p32 = por %p30, %p31
      %p33 = scmp.ne.s32.totalorder %s22, %s25
      %p34 = scmp.eq.s32.totalorder %s17, 1
      %p35 = por %p33, %p34
      %p36 = scmp.ne.s32.totalorder %s25, %s26
      %p37 = scmp.eq.s32.totalorder %s17, 0
      %p38 = por %p36, %p37
      %p39 = scmp.ne.s32.totalorder %s25, %s26
      %p40 = scmp.eq.s32.totalorder %s18, 1
      %p41 = por %p39, %p40
      %p43 = scmp.ne.s32.totalorder %s26, %s42
      %p44 = scmp.eq.s32.totalorder %s18, 0
      %p45 = por %p43, %p44
      %s46 = ssub.s32 %s12, %s19
      %p47 = scmp.eq.s32.totalorder %s46, 0
      %s49 = sadd.s32 %s48, 1
      %s50 = scalar_select %p47, %s48, %s49
      %p53 = pneg %p47
      %p54 = scmp.eq.s32.totalorder %s12, 1
      %p55 = por %p53, %p54
      %p56 = scmp.ne.s32.totalorder %s48, %s51
      %p57 = scmp.eq.s32.totalorder %s12, 0
      %p58 = por %p56, %p57
      %p59 = scmp.ne.s32.totalorder %s48, %s51
      %p60 = scmp.eq.s32.totalorder %s17, 1
      %p61 = por %p59, %p60
      %p62 = scmp.ne.s32.totalorder %s51, %s52
      %p63 = scmp.eq.s32.totalorder %s17, 0
      %p64 = por %p62, %p63
      %p65 = scmp.ne.s32.totalorder %s51, %s52
      %p66 = scmp.eq.s32.totalorder %s18, 1
      %p67 = por %p65, %p66
      %p69 = scmp.ne.s32.totalorder %s52, %s68
      %p70 = scmp.eq.s32.totalorder %s18, 0
      %p71 = por %p69, %p70
      %s72 = ssub.s32 %s12, %s19
      %p73 = scmp.eq.s32.totalorder %s72, 0
      %s75 = sadd.s32 %s74, 1
      %s76 = scalar_select %p73, %s74, %s75
      %p79 = pneg %p73
      %p80 = scmp.eq.s32.totalorder %s12, 1
      %p81 = por %p79, %p80
      %p82 = scmp.ne.s32.totalorder %s74, %s77
      %p83 = scmp.eq.s32.totalorder %s12, 0
      %p84 = por %p82, %p83
      %p85 = scmp.ne.s32.totalorder %s74, %s77
      %p86 = scmp.eq.s32.totalorder %s17, 1
      %p87 = por %p85, %p86
      %p88 = scmp.ne.s32.totalorder %s77, %s78
      %p89 = scmp.eq.s32.totalorder %s17, 0
      %p90 = por %p88, %p89
      %p91 = scmp.ne.s32.totalorder %s77, %s78
      %p92 = scmp.eq.s32.totalorder %s18, 1
      %p93 = por %p91, %p92
      %p95 = scmp.ne.s32.totalorder %s78, %s94
      %p96 = scmp.eq.s32.totalorder %s18, 0
      %p97 = por %p95, %p96
      %s99 = sadd.s32 %s98, 1
      %p102 = scmp.eq.s32.totalorder %s12, 1
      %p103 = scmp.ne.s32.totalorder %s98, %s100
      %p104 = scmp.eq.s32.totalorder %s12, 0
      %p105 = por %p103, %p104
      %p106 = scmp.ne.s32.totalorder %s98, %s100
      %p107 = scmp.eq.s32.totalorder %s17, 1
      %p108 = por %p106, %p107
      %p109 = scmp.ne.s32.totalorder %s100, %s101
      %p110 = scmp.eq.s32.totalorder %s17, 0
      %p111 = por %p109, %p110
      %p112 = scmp.ne.s32.totalorder %s100, %s101
      %p113 = scmp.eq.s32.totalorder %s18, 1
      %p114 = por %p112, %p113
      %p116 = scmp.ne.s32.totalorder %s101, %s115
      %p117 = scmp.eq.s32.totalorder %s18, 0
      %p118 = por %p116, %p117
      %s120 = sadd.s32 %s119, 1
      %p123 = scmp.eq.s32.totalorder %s12, 1
      %p124 = scmp.ne.s32.totalorder %s119, %s121
      %p125 = scmp.eq.s32.totalorder %s12, 0
      %p126 = por %p124, %p125
      %p127 = scmp.ne.s32.totalorder %s119, %s121
      %p128 = scmp.eq.s32.totalorder %s17, 1
      %p129 = por %p127, %p128
      %p130 = scmp.ne.s32.totalorder %s121, %s122
      %p131 = scmp.eq.s32.totalorder %s17, 0
      %p132 = por %p130, %p131
      %p133 = scmp.ne.s32.totalorder %s121, %s122
      %p134 = scmp.eq.s32.totalorder %s18, 1
      %p135 = por %p133, %p134
      %p137 = scmp.ne.s32.totalorder %s122, %s136
      %p138 = scmp.eq.s32.totalorder %s18, 0
      %p139 = por %p137, %p138
      %s141 = sadd.s32 %s140, 1
      %p144 = scmp.eq.s32.totalorder %s12, 1
      %p145 = scmp.ne.s32.totalorder %s140, %s142
      %p146 = scmp.eq.s32.totalorder %s12, 0
      %p147 = por %p145, %p146
      %p148 = scmp.ne.s32.totalorder %s140, %s142
      %p149 = scmp.eq.s32.totalorder %s17, 1
      %p150 = por %p148, %p149
      %p151 = scmp.ne.s32.totalorder %s142, %s143
      %p152 = scmp.eq.s32.totalorder %s17, 0
      %p153 = por %p151, %p152
      %p154 = scmp.ne.s32.totalorder %s142, %s143
      %p155 = scmp.eq.s32.totalorder %s18, 1
      %p156 = por %p154, %p155
      %p158 = scmp.ne.s32.totalorder %s143, %s157
      %p159 = scmp.eq.s32.totalorder %s18, 0
      %p160 = por %p158, %p159
      %s161 = ssub.s32 %s12, %s19
      %p162 = scmp.eq.s32.totalorder %s161, 0
      %s164 = sadd.s32 %s163, 1
      %s165 = scalar_select %p162, %s163, %s164
      %p168 = pneg %p162
      %p169 = scmp.eq.s32.totalorder %s12, 1
      %p170 = por %p168, %p169
      %p171 = scmp.ne.s32.totalorder %s163, %s166
      %p172 = scmp.eq.s32.totalorder %s12, 0
      %p173 = por %p171, %p172
      %p174 = scmp.ne.s32.totalorder %s163, %s166
      %p175 = scmp.eq.s32.totalorder %s17, 1
      %p176 = por %p174, %p175
      %p177 = scmp.ne.s32.totalorder %s166, %s167
      %p178 = scmp.eq.s32.totalorder %s17, 0
      %p179 = por %p177, %p178
      %p180 = scmp.ne.s32.totalorder %s166, %s167
      %p181 = scmp.eq.s32.totalorder %s18, 1
      %p182 = por %p180, %p181
      %p184 = scmp.ne.s32.totalorder %s167, %s183
      %p185 = scmp.eq.s32.totalorder %s18, 0
      %p186 = por %p184, %p185
      %p187 = scmp.le.s32.totalorder 1, %s12
      %p188 = scmp.lt.s32.totalorder %s12, 3
      %p189 = pnand %p187, %p188
      %p190 = pneg %p189
      // Predicated region
      $region9: #{yolo_loss.1} parent=5 // pred_check
        _
      $region10: #{yolo_loss.1} parent=5 // pred_check_branch
        %192 = sbr.rel (%p189) target = $region12
      $region11: #{yolo_loss.1} parent=5 // pred_region
        %s193 = ssub.s32 %s12, 1
        // Predicated region
        $region13: #{yolo_loss.1} parent=11 // pred_check
          %p194 = pneg %p111
        $region14: #{yolo_loss.1} parent=11 // pred_check_branch
          %196 = sbr.rel (%p194) target = $region16
        $region15: #{yolo_loss.1} parent=11 // pred_region
          _
        $region16: #{yolo_loss.1} parent=11 // pred_fallthru
          _
        // Predicated region
        $region17: #{yolo_loss.1} parent=11 // pred_check
          %p197 = pneg %p132
        $region18: #{yolo_loss.1} parent=11 // pred_check_branch
          %199 = sbr.rel (%p197) target = $region20
        $region19: #{yolo_loss.1} parent=11 // pred_region
          _
        $region20: #{yolo_loss.1} parent=11 // pred_fallthru
          _
        // Predicated region
        $region21: #{yolo_loss.1} parent=11 // pred_check
          %p200 = pneg %p153
        $region22: #{yolo_loss.1} parent=11 // pred_check_branch
          %202 = sbr.rel (%p200) target = $region24
        $region23: #{yolo_loss.1} parent=11 // pred_region
          _
        $region24: #{yolo_loss.1} parent=11 // pred_fallthru
          _
      $region12: #{yolo_loss.1} parent=5 // pred_fallthru
        _
      %p203 = scmp.lt.s32.totalorder %s12, 2
      // Predicated region
      $region25: #{yolo_loss.1} parent=5 // pred_check
        %p204 = pneg %p203
      $region26: #{yolo_loss.1} parent=5 // pred_check_branch
        %206 = sbr.rel (%p204) target = $region28
      $region27: #{yolo_loss.1} parent=5 // pred_region
        // Predicated region
        $region29: #{yolo_loss.1} parent=27 // pred_check
          %p207 = pneg %p32
        $region30: #{yolo_loss.1} parent=27 // pred_check_branch
          %209 = sbr.rel (%p207) target = $region32
        $region31: #{yolo_loss.1} parent=27 // pred_region
          %s210 = sand.u32 %s22, 1
          %s211 = sand.u32 %s22, 1
          %s212 = smul.addr %s211, 48
          %s213 = scalar_lea.vmem [#allocation2], %s212
          %s214 = smul.addr %s12, 72
          %s215 = sadd.s32 8, %s214
          %s216 = smul.addr %s215, 8
          %s217 = scalar_lea.vmem %s0, %s216
          // Predicated region
          $region33: #{yolo_loss.1} parent=31 // pred_check
            _
          $region34: #{yolo_loss.1} parent=31 // pred_check_branch
            %219 = sbr.rel (0) target = $region36
          $region35: #{yolo_loss.1} parent=31 // pred_region
            // Predicated region
            $region37: #{yolo_loss.1} parent=35 // pred_check
              _
            $region38: #{yolo_loss.1} parent=35 // pred_check_branch
              %221 = sbr.rel (0) target = $region40
            $region39: #{yolo_loss.1} parent=35 // pred_region
              // Predicated region
              $region52: #{yolo_loss.1} parent=39 // pred_check
                _
              $region53: #{yolo_loss.1} parent=39 // pred_check_branch
                %247 = sbr.rel (0) target = $region55
              $region54: #{yolo_loss.1} parent=39 // pred_region
                loop: start=0, step=1, limit=1
                $region56: #{yolo_loss.1} parent=54 // loop_pre_header
                  _
                $region57: #{yolo_loss.1} parent=54 // loop_header
                  %s249 = sphi 0, %s253
                  %p250 = scmp.ge.s32.totalorder %s249, 1
                  %s254 = sphi %s217, %s217
                  %s255 = sphi %s213, %s213
                $region58: #{yolo_loss.1} parent=54 // loop_header_branch
                  %252 = sbr.rel (%p250) target = $region62
                $region59: #{yolo_loss.1} parent=54 // loop_body
                  %v256 = vld [vmem:[%s254] sm:$0xff]
                  %257 = vst [vmem:[%s255] sm:$0xff] %v256
                  %v258 = vld [vmem:[%s254 + $0x8] sm:$0xff]
                  %259 = vst [vmem:[%s255 + $0x8] sm:$0xff] %v258
                  %v260 = vld [vmem:[%s254 + $0xc0] sm:$0xff]
                  %261 = vst [vmem:[%s255 + $0x10] sm:$0xff] %v260
                  %v262 = vld [vmem:[%s254 + $0xc8] sm:$0xff]
                  %263 = vst [vmem:[%s255 + $0x18] sm:$0xff] %v262
                  %v264 = vld [vmem:[%s254 + $0x180] sm:$0xff]
                  %265 = vst [vmem:[%s255 + $0x20] sm:$0xff] %v264
                  %v266 = vld [vmem:[%s254 + $0x188] sm:$0xff]
                  %267 = vst [vmem:[%s255 + $0x28] sm:$0xff] %v266
                $region60: #{yolo_loss.1} parent=54 // loop_footer
                  %s253 = sadd.s32 1, %s249
                $region61: #{yolo_loss.1} parent=54 // loop_footer_branch
                  %248 = sbr.rel target = $region57
                $region62: #{yolo_loss.1} parent=54 // loop_exit
                  _
              $region55: #{yolo_loss.1} parent=39 // pred_fallthru
                _
              // Predicated region
              $region63: #{yolo_loss.1} parent=39 // pred_check
                _
              $region64: #{yolo_loss.1} parent=39 // pred_check_branch
                %269 = sbr.rel target = $region66
              $region65: #{yolo_loss.1} parent=39 // pred_region
                _
              $region66: #{yolo_loss.1} parent=39 // pred_fallthru
                _
            $region40: #{yolo_loss.1} parent=35 // pred_fallthru
              _
            // Predicated region
            $region41: #{yolo_loss.1} parent=35 // pred_check
              _
            $region42: #{yolo_loss.1} parent=35 // pred_check_branch
              %223 = sbr.rel target = $region44
            $region43: #{yolo_loss.1} parent=35 // pred_region
              %s225 = ssub.s32 256, 1
              loop: start=0, step=1, limit=1
              $region45: #{yolo_loss.1} parent=43 // loop_pre_header
                _
              $region46: #{yolo_loss.1} parent=43 // loop_header
                %s227 = sphi 0, %s231
                %p228 = scmp.ge.s32.totalorder %s227, 1
                %s232 = sphi %s217, %s217
                %s233 = sphi %s213, %s213
              $region47: #{yolo_loss.1} parent=43 // loop_header_branch
                %230 = sbr.rel (%p228) target = $region51
              $region48: #{yolo_loss.1} parent=43 // loop_body
                %v234 = vld [vmem:[%s232] sm:%s225]
                %235 = vst [vmem:[%s233] sm:%s225] %v234
                %v236 = vld [vmem:[%s232 + $0x8] sm:%s225]
                %237 = vst [vmem:[%s233 + $0x8] sm:%s225] %v236
                %v238 = vld [vmem:[%s232 + $0xc0] sm:%s225]
                %239 = vst [vmem:[%s233 + $0x10] sm:%s225] %v238
                %v240 = vld [vmem:[%s232 + $0xc8] sm:%s225]
                %241 = vst [vmem:[%s233 + $0x18] sm:%s225] %v240
                %v242 = vld [vmem:[%s232 + $0x180] sm:%s225]
                %243 = vst [vmem:[%s233 + $0x20] sm:%s225] %v242
                %v244 = vld [vmem:[%s232 + $0x188] sm:%s225]
                %245 = vst [vmem:[%s233 + $0x28] sm:%s225] %v244
              $region49: #{yolo_loss.1} parent=43 // loop_footer
                %s231 = sadd.s32 1, %s227
              $region50: #{yolo_loss.1} parent=43 // loop_footer_branch
                %226 = sbr.rel target = $region46
              $region51: #{yolo_loss.1} parent=43 // loop_exit
                _
            $region44: #{yolo_loss.1} parent=35 // pred_fallthru
              _
          $region36: #{yolo_loss.1} parent=31 // pred_fallthru
            _
          %270 = vnop
        $region32: #{yolo_loss.1} parent=27 // pred_fallthru
          _
        // Predicated region
        $region67: #{yolo_loss.1} parent=27 // pred_check
          %p271 = pneg %p58
        $region68: #{yolo_loss.1} parent=27 // pred_check_branch
          %273 = sbr.rel (%p271) target = $region70
        $region69: #{yolo_loss.1} parent=27 // pred_region
          %s274 = sand.u32 %s48, 1
          %s275 = sand.u32 %s48, 1
          %s276 = smul.addr %s275, 24
          %s277 = scalar_lea.vmem [#allocation3], %s276
          %s278 = smul.addr %s12, 36
          %s279 = sadd.s32 4, %s278
          %s280 = smul.addr %s279, 8
          %s281 = scalar_lea.vmem %s1, %s280
          // Predicated region
          $region71: #{yolo_loss.1} parent=69 // pred_check
            _
          $region72: #{yolo_loss.1} parent=69 // pred_check_branch
            %283 = sbr.rel (0) target = $region74
          $region73: #{yolo_loss.1} parent=69 // pred_region
            // Predicated region
            $region75: #{yolo_loss.1} parent=73 // pred_check
              _
            $region76: #{yolo_loss.1} parent=73 // pred_check_branch
              %285 = sbr.rel (0) target = $region78
            $region77: #{yolo_loss.1} parent=73 // pred_region
              // Predicated region
              $region90: #{yolo_loss.1} parent=77 // pred_check
                _
              $region91: #{yolo_loss.1} parent=77 // pred_check_branch
                %305 = sbr.rel (0) target = $region93
              $region92: #{yolo_loss.1} parent=77 // pred_region
                loop: start=0, step=1, limit=1
                $region94: #{yolo_loss.1} parent=92 // loop_pre_header
                  _
                $region95: #{yolo_loss.1} parent=92 // loop_header
                  %s307 = sphi 0, %s311
                  %p308 = scmp.ge.s32.totalorder %s307, 1
                  %s312 = sphi %s281, %s281
                  %s313 = sphi %s277, %s277
                $region96: #{yolo_loss.1} parent=92 // loop_header_branch
                  %310 = sbr.rel (%p308) target = $region100
                $region97: #{yolo_loss.1} parent=92 // loop_body
                  %v314 = vld [vmem:[%s312] sm:$0xff]
                  %315 = vst [vmem:[%s313] sm:$0xff] %v314
                  %v316 = vld [vmem:[%s312 + $0x60] sm:$0xff]
                  %317 = vst [vmem:[%s313 + $0x8] sm:$0xff] %v316
                  %v318 = vld [vmem:[%s312 + $0xc0] sm:$0xff]
                  %319 = vst [vmem:[%s313 + $0x10] sm:$0xff] %v318
                $region98: #{yolo_loss.1} parent=92 // loop_footer
                  %s311 = sadd.s32 1, %s307
                $region99: #{yolo_loss.1} parent=92 // loop_footer_branch
                  %306 = sbr.rel target = $region95
                $region100: #{yolo_loss.1} parent=92 // loop_exit
                  _
              $region93: #{yolo_loss.1} parent=77 // pred_fallthru
                _
              // Predicated region
              $region101: #{yolo_loss.1} parent=77 // pred_check
                _
              $region102: #{yolo_loss.1} parent=77 // pred_check_branch
                %321 = sbr.rel target = $region104
              $region103: #{yolo_loss.1} parent=77 // pred_region
                _
              $region104: #{yolo_loss.1} parent=77 // pred_fallthru
                _
            $region78: #{yolo_loss.1} parent=73 // pred_fallthru
              _
            // Predicated region
            $region79: #{yolo_loss.1} parent=73 // pred_check
              _
            $region80: #{yolo_loss.1} parent=73 // pred_check_branch
              %287 = sbr.rel target = $region82
            $region81: #{yolo_loss.1} parent=73 // pred_region
              %s289 = ssub.s32 256, 1
              loop: start=0, step=1, limit=1
              $region83: #{yolo_loss.1} parent=81 // loop_pre_header
                _
              $region84: #{yolo_loss.1} parent=81 // loop_header
                %s291 = sphi 0, %s295
                %p292 = scmp.ge.s32.totalorder %s291, 1
                %s296 = sphi %s281, %s281
                %s297 = sphi %s277, %s277
              $region85: #{yolo_loss.1} parent=81 // loop_header_branch
                %294 = sbr.rel (%p292) target = $region89
              $region86: #{yolo_loss.1} parent=81 // loop_body
                %v298 = vld [vmem:[%s296] sm:%s289]
                %299 = vst [vmem:[%s297] sm:%s289] %v298
                %v300 = vld [vmem:[%s296 + $0x60] sm:%s289]
                %301 = vst [vmem:[%s297 + $0x8] sm:%s289] %v300
                %v302 = vld [vmem:[%s296 + $0xc0] sm:%s289]
                %303 = vst [vmem:[%s297 + $0x10] sm:%s289] %v302
              $region87: #{yolo_loss.1} parent=81 // loop_footer
                %s295 = sadd.s32 1, %s291
              $region88: #{yolo_loss.1} parent=81 // loop_footer_branch
                %290 = sbr.rel target = $region84
              $region89: #{yolo_loss.1} parent=81 // loop_exit
                _
            $region82: #{yolo_loss.1} parent=73 // pred_fallthru
              _
          $region74: #{yolo_loss.1} parent=69 // pred_fallthru
            _
          %322 = vnop
        $region70: #{yolo_loss.1} parent=27 // pred_fallthru
          _
        // Predicated region
        $region105: #{yolo_loss.1} parent=27 // pred_check
          %p323 = pneg %p84
        $region106: #{yolo_loss.1} parent=27 // pred_check_branch
          %325 = sbr.rel (%p323) target = $region108
        $region107: #{yolo_loss.1} parent=27 // pred_region
          %s326 = sand.u32 %s74, 1
          %s327 = sand.u32 %s74, 1
          %s328 = smul.addr %s327, 12
          %s329 = scalar_lea.vmem [#allocation4], %s328
          %s330 = smul.addr %s12, 36
          %s331 = sadd.s32 4, %s330
          %s332 = smul.addr %s331, 4
          %s333 = scalar_lea.vmem %s2, %s332
          // Predicated region
          $region109: #{yolo_loss.1} parent=107 // pred_check
            _
          $region110: #{yolo_loss.1} parent=107 // pred_check_branch
            %335 = sbr.rel (0) target = $region112
          $region111: #{yolo_loss.1} parent=107 // pred_region
            // Predicated region
            $region113: #{yolo_loss.1} parent=111 // pred_check
              _
            $region114: #{yolo_loss.1} parent=111 // pred_check_branch
              %337 = sbr.rel target = $region116
            $region115: #{yolo_loss.1} parent=111 // pred_region
              // Predicated region
              $region128: #{yolo_loss.1} parent=115 // pred_check
                _
              $region129: #{yolo_loss.1} parent=115 // pred_check_branch
                %357 = sbr.rel (0) target = $region131
              $region130: #{yolo_loss.1} parent=115 // pred_region
                loop: start=0, step=1, limit=1
                $region132: #{yolo_loss.1} parent=130 // loop_pre_header
                  _
                $region133: #{yolo_loss.1} parent=130 // loop_header
                  %s359 = sphi 0, %s363
                  %p360 = scmp.ge.s32.totalorder %s359, 1
                  %s364 = sphi %s333, %s333
                  %s365 = sphi %s329, %s329
                $region134: #{yolo_loss.1} parent=130 // loop_header_branch
                  %362 = sbr.rel (%p360) target = $region138
                $region135: #{yolo_loss.1} parent=130 // loop_body
                  _
                $region136: #{yolo_loss.1} parent=130 // loop_footer
                  %s363 = sadd.s32 1, %s359
                $region137: #{yolo_loss.1} parent=130 // loop_footer_branch
                  %358 = sbr.rel target = $region133
                $region138: #{yolo_loss.1} parent=130 // loop_exit
                  _
                %s367 = ssub.s32 16, 1
                loop: start=0, step=1, limit=1
                $region139: #{yolo_loss.1} parent=130 // loop_pre_header
                  _
                $region140: #{yolo_loss.1} parent=130 // loop_header
                  %s369 = sphi 0, %s373
                  %p370 = scmp.ge.s32.totalorder %s369, 1
                  %s374 = sphi %s333, %s333
                  %s375 = sphi %s329, %s329
                $region141: #{yolo_loss.1} parent=130 // loop_header_branch
                  %372 = sbr.rel (%p370) target = $region145
                $region142: #{yolo_loss.1} parent=130 // loop_body
                  %v376 = vld [vmem:[%s374] sm:%s367]
                  %377 = vst [vmem:[%s375] sm:%s367] %v376
                  %v378 = vld [vmem:[%s374 + $0x30] sm:%s367]
                  %379 = vst [vmem:[%s375 + $0x4] sm:%s367] %v378
                  %v380 = vld [vmem:[%s374 + $0x60] sm:%s367]
                  %381 = vst [vmem:[%s375 + $0x8] sm:%s367] %v380
                $region143: #{yolo_loss.1} parent=130 // loop_footer
                  %s373 = sadd.s32 1, %s369
                $region144: #{yolo_loss.1} parent=130 // loop_footer_branch
                  %368 = sbr.rel target = $region140
                $region145: #{yolo_loss.1} parent=130 // loop_exit
                  _
              $region131: #{yolo_loss.1} parent=115 // pred_fallthru
                _
            $region116: #{yolo_loss.1} parent=111 // pred_fallthru
              _
            // Predicated region
            $region117: #{yolo_loss.1} parent=111 // pred_check
              _
            $region118: #{yolo_loss.1} parent=111 // pred_check_branch
              %339 = sbr.rel (0) target = $region120
            $region119: #{yolo_loss.1} parent=111 // pred_region
              %s341 = ssub.s32 16, 1
              loop: start=0, step=1, limit=1
              $region121: #{yolo_loss.1} parent=119 // loop_pre_header
                _
              $region122: #{yolo_loss.1} parent=119 // loop_header
                %s343 = sphi 0, %s347
                %p344 = scmp.ge.s32.totalorder %s343, 1
                %s348 = sphi %s333, %s333
                %s349 = sphi %s329, %s329
              $region123: #{yolo_loss.1} parent=119 // loop_header_branch
                %346 = sbr.rel (%p344) target = $region127
              $region124: #{yolo_loss.1} parent=119 // loop_body
                %v350 = vld [vmem:[%s348] sm:%s341]
                %351 = vst [vmem:[%s349] sm:%s341] %v350
                %v352 = vld [vmem:[%s348 + $0x30] sm:%s341]
                %353 = vst [vmem:[%s349 + $0x4] sm:%s341] %v352
                %v354 = vld [vmem:[%s348 + $0x60] sm:%s341]
                %355 = vst [vmem:[%s349 + $0x8] sm:%s341] %v354
              $region125: #{yolo_loss.1} parent=119 // loop_footer
                %s347 = sadd.s32 1, %s343
              $region126: #{yolo_loss.1} parent=119 // loop_footer_branch
                %342 = sbr.rel target = $region122
              $region127: #{yolo_loss.1} parent=119 // loop_exit
                _
            $region120: #{yolo_loss.1} parent=111 // pred_fallthru
              _
          $region112: #{yolo_loss.1} parent=107 // pred_fallthru
            _
          %382 = vnop
        $region108: #{yolo_loss.1} parent=27 // pred_fallthru
          _
      $region28: #{yolo_loss.1} parent=5 // pred_fallthru
        _
      %p383 = scmp.le.s32.totalorder 1, %s12
      %p384 = scmp.lt.s32.totalorder %s12, 3
      %p385 = pnand %p383, %p384
      %p386 = pneg %p385
      // Predicated region
      $region146: #{yolo_loss.1} parent=5 // pred_check
        _
      $region147: #{yolo_loss.1} parent=5 // pred_check_branch
        %388 = sbr.rel (%p385) target = $region149
      $region148: #{yolo_loss.1} parent=5 // pred_region
        %s389 = ssub.s32 %s12, 1
        %s390 = sand.u32 %s25, 1
        %s391 = sand.u32 %s25, 1
        %s392 = smul.addr %s391, 48
        %s393 = scalar_lea.vmem [#allocation2], %s392
        // Predicated region
        $region150: #{yolo_loss.1} parent=148 // pred_check
          %p394 = pneg %p38
        $region151: #{yolo_loss.1} parent=148 // pred_check_branch
          %396 = sbr.rel (%p394) target = $region153
        $region152: #{yolo_loss.1} parent=148 // pred_region
          _
        $region153: #{yolo_loss.1} parent=148 // pred_fallthru
          _
        %s397 = sand.u32 %s51, 1
        %s398 = sand.u32 %s51, 1
        %s399 = smul.addr %s398, 24
        %s400 = scalar_lea.vmem [#allocation3], %s399
        // Predicated region
        $region154: #{yolo_loss.1} parent=148 // pred_check
          %p401 = pneg %p64
        $region155: #{yolo_loss.1} parent=148 // pred_check_branch
          %403 = sbr.rel (%p401) target = $region157
        $region156: #{yolo_loss.1} parent=148 // pred_region
          _
        $region157: #{yolo_loss.1} parent=148 // pred_fallthru
          _
        %s404 = sand.u32 %s77, 1
        %s405 = sand.u32 %s77, 1
        %s406 = smul.addr %s405, 12
        %s407 = scalar_lea.vmem [#allocation4], %s406
        // Predicated region
        $region158: #{yolo_loss.1} parent=148 // pred_check
          %p408 = pneg %p90
        $region159: #{yolo_loss.1} parent=148 // pred_check_branch
          %410 = sbr.rel (%p408) target = $region161
        $region160: #{yolo_loss.1} parent=148 // pred_region
          _
        $region161: #{yolo_loss.1} parent=148 // pred_fallthru
          _
        %s411 = sand.u32 %s25, 1
        %s412 = sand.u32 %s25, 1
        %s413 = smul.addr %s412, 48
        %s414 = scalar_lea.vmem [#allocation2], %s413
        %p415 = pneg %p38
        %p416 = pneg %p35
        %s417 = sand.u32 %s51, 1
        %s418 = sand.u32 %s51, 1
        %s419 = smul.addr %s418, 24
        %s420 = scalar_lea.vmem [#allocation3], %s419
        %p421 = pneg %p64
        %p422 = pneg %p61
        %s423 = sand.u32 %s77, 1
        %s424 = sand.u32 %s77, 1
        %s425 = smul.addr %s424, 12
        %s426 = scalar_lea.vmem [#allocation4], %s425
        %p427 = pneg %p90
        %p428 = pneg %p87
        %p429 = pneg %p111
        %p430 = pneg %p108
        %p431 = pneg %p132
        %p432 = pneg %p129
        %p433 = pneg %p153
        %p434 = pneg %p150
        %p435 = pneg %p179
        %p436 = pneg %p176
        %p437 = scmp.lt.s32.totalorder %s17, 1
        %s438 = scalar_select %p437, %s17, 1
        %s439 = scalar_lea.vmem %s6, %s438
        %p440 = scmp.lt.s32.totalorder %s17, 1
        %s441 = scalar_select %p440, %s17, 1
        %s442 = scalar_lea.vmem %s6, %s441
        %v443 = vld [vmem:[%s393] sm:$0xff]
        %v444 = vld [vmem:[%s393 + $0x8] sm:$0xff]
        %v445 = vld [vmem:[%s393 + $0x10] sm:$0xff]
        %v446 = vld [vmem:[%s393 + $0x18] sm:$0xff]
        %v447 = vld [vmem:[%s393 + $0x20] sm:$0xff]
        %v448 = vld [vmem:[%s393 + $0x28] sm:$0xff]
        %v449 = vmax.f32 %v443, 0.0
        %v450 = vmax.f32 %v444, 0.0
        %v451 = vmax.f32 %v445, 0.0
        %v452 = vmax.f32 %v446, 0.0
        %v453 = vmax.f32 %v447, 0.0
        %v454 = vmax.f32 %v448, 0.0
        %v455 = vand.u32 2147483647, %v443
        %v456 = vand.u32 2147483647, %v444
        %v457 = vand.u32 2147483647, %v445
        %v458 = vand.u32 2147483647, %v446
        %v459 = vand.u32 2147483647, %v447
        %v460 = vand.u32 2147483647, %v448
        %v461 = vsub.f32 0.0, %v455
        %v462 = vsub.f32 0.0, %v456
        %v463 = vsub.f32 0.0, %v457
        %v464 = vsub.f32 0.0, %v458
        %v465 = vsub.f32 0.0, %v459
        %v466 = vsub.f32 0.0, %v460
        %v467 = vmul.f32 %v461, 1.442695
        %v468 = vpow.pop %v467
        %v469 = vmul.f32 %v462, 1.442695
        %v470 = vpow.pop %v469
        %v471 = vmul.f32 %v463, 1.442695
        %v472 = vpow.pop %v471
        %v473 = vmul.f32 %v464, 1.442695
        %v474 = vpow.pop %v473
        %v475 = vmul.f32 %v465, 1.442695
        %v476 = vpow.pop %v475
        %v477 = vmul.f32 %v466, 1.442695
        %v478 = vpow.pop %v477
        %v479 = vadd.f32 %v468, 1.0
        %v480 = vlog2.pop %v479
        %v481 = vmul.f32 %v480, 0.6931472
        %v482 = vmul.f32 -0.5, %v468
        %v483 = vadd.f32 %v482, 1.0
        %v484 = vmul.f32 %v483, %v468
        %v485 = vand.u32 2147483647, %v468
        %vm486 = vcmp.lt.f32.partialorder %v485, 0.0004427343
        %v487 = vsel %vm486, %v484, %v481
        %v488 = vadd.f32 %v470, 1.0
        %v489 = vlog2.pop %v488
        %v490 = vmul.f32 %v489, 0.6931472
        %v491 = vmul.f32 -0.5, %v470
        %v492 = vadd.f32 %v491, 1.0
        %v493 = vmul.f32 %v492, %v470
        %v494 = vand.u32 2147483647, %v470
        %vm495 = vcmp.lt.f32.partialorder %v494, 0.0004427343
        %v496 = vsel %vm495, %v493, %v490
        %v497 = vadd.f32 %v472, 1.0
        %v498 = vlog2.pop %v497
        %v499 = vmul.f32 %v498, 0.6931472
        %v500 = vmul.f32 -0.5, %v472
        %v501 = vadd.f32 %v500, 1.0
        %v502 = vmul.f32 %v501, %v472
        %v503 = vand.u32 2147483647, %v472
        %vm504 = vcmp.lt.f32.partialorder %v503, 0.0004427343
        %v505 = vsel %vm504, %v502, %v499
        %v506 = vadd.f32 %v474, 1.0
        %v507 = vlog2.pop %v506
        %v508 = vmul.f32 %v507, 0.6931472
        %v509 = vmul.f32 -0.5, %v474
        %v510 = vadd.f32 %v509, 1.0
        %v511 = vmul.f32 %v510, %v474
        %v512 = vand.u32 2147483647, %v474
        %vm513 = vcmp.lt.f32.partialorder %v512, 0.0004427343
        %v514 = vsel %vm513, %v511, %v508
        %v515 = vadd.f32 %v476, 1.0
        %v516 = vlog2.pop %v515
        %v517 = vmul.f32 %v516, 0.6931472
        %v518 = vmul.f32 -0.5, %v476
        %v519 = vadd.f32 %v518, 1.0
        %v520 = vmul.f32 %v519, %v476
        %v521 = vand.u32 2147483647, %v476
        %vm522 = vcmp.lt.f32.partialorder %v521, 0.0004427343
        %v523 = vsel %vm522, %v520, %v517
        %v524 = vadd.f32 %v478, 1.0
        %v525 = vlog2.pop %v524
        %v526 = vmul.f32 %v525, 0.6931472
        %v527 = vmul.f32 -0.5, %v478
        %v528 = vadd.f32 %v527, 1.0
        %v529 = vmul.f32 %v528, %v478
        %v530 = vand.u32 2147483647, %v478
        %vm531 = vcmp.lt.f32.partialorder %v530, 0.0004427343
        %v532 = vsel %vm531, %v529, %v526
        %v533 = vadd.f32 %v449, %v487
        %v534 = vadd.f32 %v450, %v496
        %v535 = vadd.f32 %v451, %v505
        %v536 = vadd.f32 %v452, %v514
        %v537 = vadd.f32 %v453, %v523
        %v538 = vadd.f32 %v454, %v532
        %vm539 = vcmask 130048
        %v540 = vsel %vm539, %v533, 0.0
        %v541 = vsel %vm539, %v534, 0.0
        %v542 = vadd.f32 %v540, %v541
        %v543 = vsel %vm539, %v535, 0.0
        %v544 = vadd.f32 %v542, %v543
        %v545 = vsel %vm539, %v536, 0.0
        %v546 = vadd.f32 %v544, %v545
        %v547 = vsel %vm539, %v537, 0.0
        %v548 = vadd.f32 %v546, %v547
        %v549 = vsel %vm539, %v538, 0.0
        %v550 = vadd.f32 %v548, %v549
        %551 = vadd.xlane.f32.xlu0 %v550
        %v552 = vpop.xlane.xlu0 %551
        %v553 = vrot.slane %v552, 4
        %v554 = vadd.f32 %v552, %v553
        %v555 = vrot.slane %v554, 2
        %v556 = vadd.f32 %v554, %v555
        %v557 = vrot.slane %v556, 1
        %v558 = vadd.f32 %v556, %v557
        %s559 = vtos %v558
        %s560 = smul.f32 %s559, 0.00086805556
        %s561 = sadd.f32 %s560, 0.0
        %v562 = vld [vmem:[%s400] sm:$0xff]
        %v563 = vld [vmem:[%s400 + $0x8] sm:$0xff]
        %v564 = vld [vmem:[%s400 + $0x10] sm:$0xff]
        %v565 = vmax.f32 %v562, 0.0
        %v566 = vmax.f32 %v563, 0.0
        %v567 = vmax.f32 %v564, 0.0
        %v568 = vand.u32 2147483647, %v562
        %v569 = vand.u32 2147483647, %v563
        %v570 = vand.u32 2147483647, %v564
        %v571 = vsub.f32 0.0, %v568
        %v572 = vsub.f32 0.0, %v569
        %v573 = vsub.f32 0.0, %v570
        %v574 = vmul.f32 %v571, 1.442695
        %v575 = vpow.pop %v574
        %v576 = vmul.f32 %v572, 1.442695
        %v577 = vpow.pop %v576
        %v578 = vmul.f32 %v573, 1.442695
        %v579 = vpow.pop %v578
        %v580 = vadd.f32 %v575, 1.0
        %v581 = vlog2.pop %v580
        %v582 = vmul.f32 %v581, 0.6931472
        %v583 = vmul.f32 -0.5, %v575
        %v584 = vadd.f32 %v583, 1.0
        %v585 = vmul.f32 %v584, %v575
        %v586 = vand.u32 2147483647, %v575
        %vm587 = vcmp.lt.f32.partialorder %v586, 0.0004427343
        %v588 = vsel %vm587, %v585, %v582
        %v589 = vadd.f32 %v577, 1.0
        %v590 = vlog2.pop %v589
        %v591 = vmul.f32 %v590, 0.6931472
        %v592 = vmul.f32 -0.5, %v577
        %v593 = vadd.f32 %v592, 1.0
        %v594 = vmul.f32 %v593, %v577
        %v595 = vand.u32 2147483647, %v577
        %vm596 = vcmp.lt.f32.partialorder %v595, 0.0004427343
        %v597 = vsel %vm596, %v594, %v591
        %v598 = vadd.f32 %v579, 1.0
        %v599 = vlog2.pop %v598
        %v600 = vmul.f32 %v599, 0.6931472
        %v601 = vmul.f32 -0.5, %v579
        %v602 = vadd.f32 %v601, 1.0
        %v603 = vmul.f32 %v602, %v579
        %v604 = vand.u32 2147483647, %v579
        %vm605 = vcmp.lt.f32.partialorder %v604, 0.0004427343
        %v606 = vsel %vm605, %v603, %v600
        %v607 = vadd.f32 %v565, %v588
        %v608 = vadd.f32 %v566, %v597
        %v609 = vadd.f32 %v567, %v606
        %vm610 = vcmask 64512
        %v611 = vsel %vm610, %v607, 0.0
        %v612 = vsel %vm610, %v608, 0.0
        %v613 = vadd.f32 %v611, %v612
        %v614 = vsel %vm610, %v609, 0.0
        %v615 = vadd.f32 %v613, %v614
        %616 = vadd.xlane.f32.xlu0 %v615
        %v617 = vpop.xlane.xlu0 %616
        %v618 = vrot.slane %v617, 4
        %v619 = vadd.f32 %v617, %v618
        %v620 = vrot.slane %v619, 2
        %v621 = vadd.f32 %v619, %v620
        %v622 = vrot.slane %v621, 1
        %v623 = vadd.f32 %v621, %v622
        %s624 = vtos %v623
        %s625 = smul.f32 %s624, 0.00086805556
        %s626 = sadd.f32 %s561, %s625
        %v627 = vld [vmem:[%s407] sm:$0xf]
        %v628 = vld [vmem:[%s407 + $0x4] sm:$0xf]
        %v629 = vld [vmem:[%s407 + $0x8] sm:$0xf]
        %v630 = vmax.f32 %v627, 0.0
        %v631 = vmax.f32 %v628, 0.0
        %v632 = vmax.f32 %v629, 0.0
        %v633 = vand.u32 2147483647, %v627
        %v634 = vand.u32 2147483647, %v628
        %v635 = vand.u32 2147483647, %v629
        %v636 = vsub.f32 0.0, %v633
        %v637 = vsub.f32 0.0, %v634
        %v638 = vsub.f32 0.0, %v635
        %v639 = vmul.f32 %v636, 1.442695
        %v640 = vpow.pop %v639
        %v641 = vmul.f32 %v637, 1.442695
        %v642 = vpow.pop %v641
        %v643 = vmul.f32 %v638, 1.442695
        %v644 = vpow.pop %v643
        %v645 = vadd.f32 %v640, 1.0
        %v646 = vlog2.pop %v645
        %v647 = vmul.f32 %v646, 0.6931472
        %v648 = vmul.f32 -0.5, %v640
        %v649 = vadd.f32 %v648, 1.0
        %v650 = vmul.f32 %v649, %v640
        %v651 = vand.u32 2147483647, %v640
        %vm652 = vcmp.lt.f32.partialorder %v651, 0.0004427343
        %v653 = vsel %vm652, %v650, %v647
        %v654 = vadd.f32 %v642, 1.0
        %v655 = vlog2.pop %v654
        %v656 = vmul.f32 %v655, 0.6931472
        %v657 = vmul.f32 -0.5, %v642
        %v658 = vadd.f32 %v657, 1.0
        %v659 = vmul.f32 %v658, %v642
        %v660 = vand.u32 2147483647, %v642
        %vm661 = vcmp.lt.f32.partialorder %v660, 0.0004427343
        %v662 = vsel %vm661, %v659, %v656
        %v663 = vadd.f32 %v644, 1.0
        %v664 = vlog2.pop %v663
        %v665 = vmul.f32 %v664, 0.6931472
        %v666 = vmul.f32 -0.5, %v644
        %v667 = vadd.f32 %v666, 1.0
        %v668 = vmul.f32 %v667, %v644
        %v669 = vand.u32 2147483647, %v644
        %vm670 = vcmp.lt.f32.partialorder %v669, 0.0004427343
        %v671 = vsel %vm670, %v668, %v665
        %v672 = vadd.f32 %v630, %v653
        %v673 = vadd.f32 %v631, %v662
        %v674 = vadd.f32 %v632, %v671
        %vm675 = vcmask 27648
        %v676 = vsel %vm675, %v672, 0.0
        %v677 = vsel %vm675, %v673, 0.0
        %v678 = vadd.f32 %v676, %v677
        %v679 = vsel %vm675, %v674, 0.0
        %v680 = vadd.f32 %v678, %v679
        %681 = vadd.xlane.f32.xlu0 %v680
        %v682 = vpop.xlane.xlu0 %681
        %v683 = vrot.slane %v682, 4
        %v684 = vadd.f32 %v682, %v683
        %v685 = vrot.slane %v684, 2
        %v686 = vadd.f32 %v684, %v685
        %v687 = vrot.slane %v686, 1
        %v688 = vadd.f32 %v686, %v687
        %s689 = vtos %v688
        %s690 = smul.f32 %s689, 0.0013888889
        %s691 = sadd.f32 %s626, %s690
        %v692 = vlaneseq
        %v693 = vand.u32 %v692, 127
        %vm694 = vcmp.eq.s32.totalorder %v693, 0
        %v695 = vstv %s691
        %v696 = vsel %vm694, %v695, 0.0
        %697 = vst [vmem:[%s442] sm:$0x1] %v696
        %p698 = scmp.eq.s32.totalorder %s17, 0
        // Predicated region
        $region162: #{yolo_loss.1} parent=148 // pred_check
          %p699 = pneg %p698
        $region163: #{yolo_loss.1} parent=148 // pred_check_branch
          %701 = sbr.rel (%p699) target = $region165
        $region164: #{yolo_loss.1} parent=148 // pred_region
          %v702 = vld [vmem:[%s3] sm:$0xff]
          %v704 = vrot.slane %v702, 4
          %v706 = vmax.f32 %v702, %v704
          %v707 = vmin.f32 %v702, %v704
          %v709 = vrot.slane %v706, 6
          %v711 = vsub.f32 %v707, %v709
          %v712 = vmax.f32 %v711, 0.0
          %v714 = vrot.slane %v712, 1
          %v716 = vmul.f32 %v712, %v714
          %v717 = vrot.slane %v702, 6
          %v719 = vsub.f32 %v702, %v717
          %v721 = vrot.slane %v719, 1
          %v723 = vmul.f32 %v719, %v721
          %v725 = vrot.slane %v723, 4
          %v727 = vadd.f32 %v723, %v725
          %v728 = vsub.f32 %v727, %v716
          %v729 = vadd.f32 %v728, 1e-07
          %v730 = vrcp.pop %v729
          %v731 = vmul.f32 %v729, %v730
          %v732 = vsub.f32 1.0, %v731
          %v733 = vmul.f32 %v730, %v732
          %v734 = vadd.f32 %v730, %v733
          %vm735 = vweird.f32 %v729
          %vm736 = vweird.f32 %v730
          %vm737 = vmor %vm735, %vm736
          %v738 = vsel %vm737, %v730, %v734
          %v739 = vand.u32 2147483647, %v729
          %vm740 = vcmp.eq.f32.partialorder %v739, 8.507059e+37
          %v741 = vand.u32 %v729, 2147483648
          %v742 = vor.u32 1.1754944e-38, %v741
          %v743 = vsel %vm740, %v742, %v738
          %v744 = vmul.f32 %v716, %v743
          %v745 = vrot.slane %v702, 2
          %v747 = vadd.f32 %v702, %v745
          %v749 = vrot.slane %v747, 4
          %v751 = vsub.f32 %v747, %v749
          %v752 = vmul.f32 %v751, 0.5
          %v753 = vmul.f32 %v752, %v752
          %v755 = vrot.slane %v753, 1
          %v757 = vadd.f32 %v753, %v755
          %v759 = vrot.slane %v707, 6
          %v761 = vsub.f32 %v706, %v759
          %v762 = vmul.f32 %v761, %v761
          %v764 = vrot.slane %v762, 1
          %v766 = vadd.f32 %v762, %v764
          %v767 = vadd.f32 %v766, 1e-07
          %v768 = vld [vmem:[%s5] sm:$0xff]
          %v769 = vmul.f32 %v768, 0.40528473
          %v770 = vmul.f32 %v769, %v768
          %v771 = vsub.f32 1.0, %v744
          %v773 = vrot.slane %v770, 6
          %v775 = vadd.f32 %v771, %v773
          %v776 = vadd.f32 %v775, 1e-07
          %v778 = vrot.slane %v776, 2
          %v780 = vrcp.pop %v778
          %v781 = vmul.f32 %v778, %v780
          %v782 = vsub.f32 1.0, %v781
          %v783 = vmul.f32 %v780, %v782
          %v784 = vadd.f32 %v780, %v783
          %vm785 = vweird.f32 %v778
          %vm786 = vweird.f32 %v780
          %vm787 = vmor %vm785, %vm786
          %v788 = vsel %vm787, %v780, %v784
          %v789 = vand.u32 2147483647, %v778
          %vm790 = vcmp.eq.f32.partialorder %v789, 8.507059e+37
          %v791 = vand.u32 %v778, 2147483648
          %v792 = vor.u32 1.1754944e-38, %v791
          %v793 = vsel %vm790, %v792, %v788
          %v794 = vmul.f32 %v770, %v793
          %v796 = vrot.slane %v767, 2
          %v798 = vrcp.pop %v796
          %v799 = vmul.f32 %v796, %v798
          %v800 = vsub.f32 1.0, %v799
          %v801 = vmul.f32 %v798, %v800
          %v802 = vadd.f32 %v798, %v801
          %vm803 = vweird.f32 %v796
          %vm804 = vweird.f32 %v798
          %vm805 = vmor %vm803, %vm804
          %v806 = vsel %vm805, %v798, %v802
          %v807 = vand.u32 2147483647, %v796
          %vm808 = vcmp.eq.f32.partialorder %v807, 8.507059e+37
          %v809 = vand.u32 %v796, 2147483648
          %v810 = vor.u32 1.1754944e-38, %v809
          %v811 = vsel %vm808, %v810, %v806
          %v812 = vmul.f32 %v757, %v811
          %v813 = vmul.f32 %v794, %v770
          %v814 = vadd.f32 %v812, %v813
          %v816 = vrot.slane %v814, 6
          %v818 = vsub.f32 %v744, %v816
          %v819 = vsub.f32 1.0, %v818
          %v821 = vrot.slane %v768, 7
          %v823 = vmul.f32 %v819, %v821
          %v825 = vrot.slane %v823, 2
          %vm827 = vcmask 1040384
          %v828 = vsel %vm827, %v825, 0.0
          %829 = vadd.xlane.f32.xlu0 %v828
          %v830 = vpop.xlane.xlu0 %829
          %v831 = vrot.slane %v830, 4
          %v832 = vadd.f32 %v830, %v831
          %v833 = vrot.slane %v832, 2
          %v834 = vadd.f32 %v832, %v833
          %v835 = vrot.slane %v834, 1
          %v836 = vadd.f32 %v834, %v835
          %s837 = vtos %v836
          %v838 = vld [vmem:[%s4] sm:$0xff]
          %v839 = vld [vmem:[%s4 + $0x8] sm:$0xff]
          %v840 = vmax.f32 %v838, 0.0
          %v841 = vmul.f32 %v838, %v839
          %v842 = vsub.f32 %v840, %v841
          %v843 = vand.u32 2147483647, %v838
          %v844 = vsub.f32 0.0, %v843
          %v845 = vmul.f32 %v844, 1.442695
          %v846 = vpow.pop %v845
          %v847 = vadd.f32 %v846, 1.0
          %v848 = vlog2.pop %v847
          %v849 = vmul.f32 %v848, 0.6931472
          %v850 = vmul.f32 -0.5, %v846
          %v851 = vadd.f32 %v850, 1.0
          %v852 = vmul.f32 %v851, %v846
          %v853 = vand.u32 2147483647, %v846
          %vm854 = vcmp.lt.f32.partialorder %v853, 0.0004427343
          %v855 = vsel %vm854, %v852, %v849
          %v856 = vadd.f32 %v842, %v855
          %v857 = vperm.slane %v768, 2
          %v858 = vmul.f32 %v856, %v857
          %vm859 = vcmask 1046528
          %v860 = vsel %vm859, %v858, 0.0
          %861 = vadd.xlane.f32.xlu0 %v860
          %v862 = vpop.xlane.xlu0 %861
          %v863 = vrot.slane %v862, 4
          %v864 = vadd.f32 %v862, %v863
          %v865 = vrot.slane %v864, 2
          %v866 = vadd.f32 %v864, %v865
          %v867 = vrot.slane %v866, 1
          %v868 = vadd.f32 %v866, %v867
          %s869 = vtos %v868
          %v870 = vsub.f32 0.0, %v768
          %v871 = vrot.slane %v768, 1
          %v873 = vmul.f32 %v870, %v871
          %v875 = vrot.slane %v873, 3
          %v877 = vsel %vm827, %v875, 0.0
          %878 = vadd.xlane.f32.xlu0 %v877
          %v879 = vpop.xlane.xlu0 %878
          %v880 = vrot.slane %v879, 4
          %v881 = vadd.f32 %v879, %v880
          %v882 = vrot.slane %v881, 2
          %v883 = vadd.f32 %v881, %v882
          %v884 = vrot.slane %v883, 1
          %v885 = vadd.f32 %v883, %v884
          %s886 = vtos %v885
          %v887 = vld [vmem:[%s442] sm:$0x1]
          %vm888 = vcmp.eq.s32.totalorder %v693, 1
          %v889 = vstv %s837
          %v890 = vsel %vm888, %v889, 0.0
          %vm891 = vcmp.eq.s32.totalorder %v693, 2
          %v892 = vstv %s869
          %v893 = vsel %vm891, %v892, 0.0
          %v894 = vadd.f32 %v890, %v893
          %vm895 = vcmp.eq.s32.totalorder %v693, 3
          %v896 = vstv %s886
          %v897 = vsel %vm895, %v896, 0.0
          %v898 = vadd.f32 %v894, %v897
          %v899 = vadd.f32 %v887, %v898
          %900 = vst [vmem:[%s442] sm:$0x1] %v899
        $region165: #{yolo_loss.1} parent=148 // pred_fallthru
          _
        %p901 = scmp.lt.s32.totalorder %s17, 1
        %s902 = scalar_select %p901, %s17, 1
        %s903 = scalar_lea.vmem %s6, %s902
        // Predicated region
        $region166: #{yolo_loss.1} parent=148 // pred_check
          %p904 = pneg %p176
        $region167: #{yolo_loss.1} parent=148 // pred_check_branch
          %906 = sbr.rel (%p904) target = $region169
        $region168: #{yolo_loss.1} parent=148 // pred_region
          _
        $region169: #{yolo_loss.1} parent=148 // pred_fallthru
          _
      $region149: #{yolo_loss.1} parent=5 // pred_fallthru
        _
      %p907 = scmp.le.s32.totalorder 2, %s12
      // Predicated region
      $region170: #{yolo_loss.1} parent=5 // pred_check
        %p908 = pneg %p907
      $region171: #{yolo_loss.1} parent=5 // pred_check_branch
        %910 = sbr.rel (%p908) target = $region173
      $region172: #{yolo_loss.1} parent=5 // pred_region
        %s911 = ssub.s32 %s12, 2
        // Predicated region
        $region174: #{yolo_loss.1} parent=172 // pred_check
          %p912 = pneg %p182
        $region175: #{yolo_loss.1} parent=172 // pred_check_branch
          %914 = sbr.rel (%p912) target = $region177
        $region176: #{yolo_loss.1} parent=172 // pred_region
          %p915 = scmp.lt.s32.totalorder %s18, 1
          %s916 = scalar_select %p915, %s18, 1
          %s917 = scalar_lea.vmem %s6, %s916
        $region177: #{yolo_loss.1} parent=172 // pred_fallthru
          _
      $region173: #{yolo_loss.1} parent=5 // pred_fallthru
        _
    $region6: #{yolo_loss.1} parent=1 // loop_footer
      %s16 = sadd.s32 1, %s12
    $region7: #{yolo_loss.1} parent=1 // loop_footer_branch
      %11 = sbr.rel target = $region3
    $region8: #{yolo_loss.1} parent=1 // loop_exit
      _

</llo_original>
